<compile_context>
chip_gen: v5e
topology: v5e:2x2
jax: 0.10.0
libtpu: 0.0.40
codegen_flags: <defaults>
</compile_context>

<pallas_src>
import functools

import jax
import jax.numpy as jnp
from jax.experimental import pallas as pl
from jax.experimental.pallas import tpu as pltpu


def _make_kernel(N, Cin, Cout, L, F):
    """Fused forward kernel for static problem sizes. Single packed input slab."""
    CinL = Cin * L
    CF = Cout * F
    inv_nf = 1.0 / float(N * F)

    # Row offsets inside the fused input slab (all static).
    r_x = 0                 # rows [0, N)            : x,  width Cin*L
    r_x2 = N                # rows [N, 2N)           : x2, width Cout*F
    r_w = 2 * N             # rows [2N, 2N+Cin*L)    : W_comb^T, width Cout*F
    r_bias = r_w + CinL     # 1 row                  : folded conv+fc bias
    r_gamma = r_bias + 1    # 1 row                  : BN gamma (repeated per feature)
    r_beta = r_gamma + 1    # 1 row                  : BN beta

    def kernel(s_ref, o_ref):
        f32 = jnp.float32
        s = s_ref[...]

        # --- unpack the single slab with static slices ---
        x = s[r_x:r_x + N, 0:CinL]              # (N, Cin*L)
        x2 = s[r_x2:r_x2 + N, 0:CF]             # (N, Cout*F)
        w_t = s[r_w:r_w + CinL, 0:CF]           # (Cin*L, Cout*F)  batch-shared weight
        bias = s[r_bias:r_bias + 1, 0:CF]       # (1, CF)
        gamma = s[r_gamma:r_gamma + 1, 0:CF]    # (1, CF)
        beta = s[r_beta:r_beta + 1, 0:CF]       # (1, CF)

        # --- fused Conv1d + Linear as ONE matmul (weight shared across batch) ---
        z = jnp.dot(x, w_t, preferred_element_type=f32) + bias     # (N, Cout*F)

        # --- BatchNorm1d (training mode): per-channel stats over (batch, feature) ---
        # Pure VPU reductions: sublane sum over batch, then tiny lane sums per channel.
        s1 = jnp.sum(z, axis=0, keepdims=True)          # (1, CF) sum over batch
        s2 = jnp.sum(z * z, axis=0, keepdims=True)      # (1, CF)
        parts_m, parts_v = [], []
        for c in range(Cout):                           # Cout is tiny & static
            lo, hi = c * F, (c + 1) * F
            m = jnp.sum(s1[:, lo:hi], axis=1, keepdims=True) * inv_nf     # (1, 1)
            e2 = jnp.sum(s2[:, lo:hi], axis=1, keepdims=True) * inv_nf    # (1, 1)
            # single-pass variance; clamp at 0 against round-off
            v = jnp.maximum(e2 - m * m, 0.0)
            parts_m.append(jnp.broadcast_to(m, (1, F)))
            parts_v.append(jnp.broadcast_to(v, (1, F)))
        mean = jnp.concatenate(parts_m, axis=1)          # (1, CF)
        var = jnp.concatenate(parts_v, axis=1)           # (1, CF)
        zn = (z - mean) * jax.lax.rsqrt(var + 1e-5) * gamma + beta

        # --- Softmax over the last axis of (N, Cout, F): per F-column group ---
        outs = []
        for c in range(Cout):
            seg = zn[:, c * F:(c + 1) * F]                                   # (N, F)
            e = jnp.exp(seg - jnp.max(seg, axis=1, keepdims=True))
            d = jnp.sum(e, axis=1, keepdims=True)
            r = pl.reciprocal(d, approx=True)          # EUP slot
            r = r * (2.0 - d * r)                      # one Newton step -> full f32 precision
            outs.append(e * r)
        sm = jnp.concatenate(outs, axis=1)              # (N, CF)

        # --- ReLU(softmax(.)) == softmax(.) (strictly positive) -> dropped.  Residual add ---
        o_ref[...] = sm + x2

    return kernel


def pack_params(params, L):
    """Fold Conv1d + Linear into one batch-shared weight/bias; tile BN params.

    Hoisted out of the per-forward path: call once per parameter set.
    Returns (w_t, bias_row, gamma_row, beta_row).
    """
    conv_w, conv_b, fc_w, fc_b, gamma, beta = params
    f32 = jnp.float32
    Cout, Cin, K = conv_w.shape
    F, Lout = fc_w.shape
    assert Lout == L - K + 1, "conv output length must equal fc in_features"
    CF = Cout * F
    CinL = Cin * L

    # Combined weight: Wcomb[c,f,ci,l] = sum_{k,t: t+k=l} fc_w[f,t] * conv_w[c,ci,k]
    Wcomb = jnp.zeros((Cout, F, Cin, L), f32)
    for k in range(K):
        contrib = jnp.einsum("ci,ft->cfit",
                             conv_w[:, :, k].astype(f32), fc_w.astype(f32))  # (Cout,F,Cin,Lout)
        Wcomb = Wcomb.at[:, :, :, k:k + Lout].add(contrib)
    w_t = Wcomb.reshape(CF, CinL).T                                          # (Cin*L, Cout*F)

    # Fold conv bias through the Linear layer: conv_b[c]*sum_t fc_w[f,t] + fc_b[f]
    bias_row = (conv_b.astype(f32)[:, None] * jnp.sum(fc_w.astype(f32), axis=1)[None, :]
                + fc_b.astype(f32)[None, :]).reshape(1, CF)

    gamma_row = jnp.repeat(gamma.astype(f32), F).reshape(1, CF)
    beta_row = jnp.repeat(beta.astype(f32), F).reshape(1, CF)
    return w_t, bias_row, gamma_row, beta_row


@functools.partial(jax.jit, static_argnames=())
def model_forward(x1, x2, packed):
    """x1: (N, Cin, L) float32, x2: (N, Cout, F) float32 (PyTorch NCL layout)."""
    w_t, bias_row, gamma_row, beta_row = packed
    f32 = jnp.float32
    N, Cin, L = x1.shape
    N2, Cout, F = x2.shape
    assert N2 == N
    CinL = Cin * L
    CF = Cout * F
    assert w_t.shape == (CinL, CF)

    # ---- fuse x, residual and parameters into ONE column-padded slab (one DMA) ----
    wslab = max(CinL, CF)

    def pad(a):
        return jnp.pad(a, ((0, 0), (0, wslab - a.shape[1])))

    slab = jnp.concatenate(
        [pad(x1.astype(f32).reshape(N, CinL)),
         pad(x2.astype(f32).reshape(N, CF)),
         pad(w_t),
         pad(bias_row),
         pad(gamma_row),
         pad(beta_row)],
        axis=0)                                          # (2N + Cin*L + 3, wslab)

    kernel = _make_kernel(N, Cin, Cout, L, F)

    flops = 2 * N * CinL * CF + 16 * N * CF              # matmul + elementwise
    transcendentals = N * CF + 3 * CF                    # exp per element + rsqrt/recip per channel
    bytes_accessed = (slab.shape[0] * slab.shape[1] + N * CF) * 4

    out = pl.pallas_call(
        kernel,
        out_shape=jax.ShapeDtypeStruct((N, CF), f32),
        in_specs=[pl.BlockSpec(memory_space=pltpu.MemorySpace.VMEM)],
        out_specs=pl.BlockSpec(memory_space=pltpu.MemorySpace.VMEM),
        cost_estimate=pl.CostEstimate(flops=flops,
                                      bytes_accessed=bytes_accessed,
                                      transcendentals=transcendentals),
    )(slab)
    return out.reshape(N, Cout, F)


def reference_forward(x1, x2, params):
    """Pure-JAX reference matching the PyTorch forward (training-mode BN)."""
    conv_w, conv_b, fc_w, fc_b, gamma, beta = params
    y = jax.lax.conv_general_dilated(
        x1, conv_w, window_strides=(1,), padding="VALID",
        dimension_numbers=("NCH", "OIH", "NCH")) + conv_b[None, :, None]
    y = jnp.einsum("ncl,fl->ncf", y, fc_w) + fc_b
    mean = jnp.mean(y, axis=(0, 2), keepdims=True)
    var = jnp.mean((y - mean) ** 2, axis=(0, 2), keepdims=True)
    y = (y - mean) / jnp.sqrt(var + 1e-5) * gamma[None, :, None] + beta[None, :, None]
    y = jax.nn.softmax(y, axis=-1)
    y = jnp.maximum(y, 0.0)
    return y + x2


if __name__ == "__main__":
    key = jax.random.PRNGKey(0)
    ks = jax.random.split(key, 8)

    N, Cin, Cout, K = 2, 2, 2, 2
    L = 3          # conv output length = L - K + 1 = 2 = Linear in_features
    F = 2          # Linear out_features

    x1 = jax.random.normal(ks[0], (N, Cin, L), jnp.float32)
    x2 = jax.random.normal(ks[1], (N, Cout, F), jnp.float32)

    conv_w = 0.5 * jax.random.normal(ks[2], (Cout, Cin, K), jnp.float32)
    conv_b = 0.1 * jax.random.normal(ks[3], (Cout,), jnp.float32)
    fc_w = 0.5 * jax.random.normal(ks[4], (F, 2), jnp.float32)
    fc_b = 0.1 * jax.random.normal(ks[5], (F,), jnp.float32)
    gamma = 1.0 + 0.1 * jax.random.normal(ks[6], (Cout,), jnp.float32)
    beta = 0.1 * jax.random.normal(ks[7], (Cout,), jnp.float32)
    params = (conv_w, conv_b, fc_w, fc_b, gamma, beta)

    # Parameter folding hoisted out of the per-forward path (done once).
    packed = pack_params(params, L)
    packed = jax.block_until_ready(packed)

    out = model_forward(x1, x2, packed)
    out = jax.block_until_ready(out)

    ref = reference_forward(x1, x2, params)
    assert out.shape == (N, Cout, F), out.shape
    assert jnp.allclose(out, ref, atol=1e-5, rtol=1e-5), (out, ref)
    print("KERNEL_OK")
</pallas_src>

<mosaic_0001>
module attributes {stable_mosaic.version = 11 : i64} {
  func.func @kernel(%arg0: memref<13x6xf32, #tpu.memory_space<vmem>>, %arg1: memref<2x4xf32, #tpu.memory_space<vmem>>) attributes {dimension_semantics = [], scalar_prefetch = 0 : i64, scratch_operands = 0 : i64, tpu.core_type = #tpu.core_type<tc>} {
    %c0 = arith.constant 0 : index
    %c0_0 = arith.constant 0 : index
    %0 = vector.load %arg0[%c0, %c0_0] : memref<13x6xf32, #tpu.memory_space<vmem>>, vector<13x6xf32>
    %1 = vector.extract_strided_slice %0 {offsets = [0, 0], sizes = [2, 6], strides = [1, 1]} : vector<13x6xf32> to vector<2x6xf32>
    %2 = vector.extract_strided_slice %0 {offsets = [2, 0], sizes = [2, 4], strides = [1, 1]} : vector<13x6xf32> to vector<2x4xf32>
    %3 = vector.extract_strided_slice %0 {offsets = [4, 0], sizes = [6, 4], strides = [1, 1]} : vector<13x6xf32> to vector<6x4xf32>
    %4 = vector.extract_strided_slice %0 {offsets = [10, 0], sizes = [1, 4], strides = [1, 1]} : vector<13x6xf32> to vector<1x4xf32>
    %5 = vector.extract_strided_slice %0 {offsets = [11, 0], sizes = [1, 4], strides = [1, 1]} : vector<13x6xf32> to vector<1x4xf32>
    %6 = vector.extract_strided_slice %0 {offsets = [12, 0], sizes = [1, 4], strides = [1, 1]} : vector<13x6xf32> to vector<1x4xf32>
    %cst = arith.constant dense<0.000000e+00> : vector<2x4xf32>
    %7 = tpu.matmul %1, %3, %cst {dimension_numbers = #tpu.dot_dimension_numbers<[1], [0], [0], [1], [0, 0, 1, 1], [], []>} : vector<2x6xf32>, vector<6x4xf32>, vector<2x4xf32> -> vector<2x4xf32>
    %8 = vector.broadcast %4 : vector<1x4xf32> to vector<2x4xf32>
    %9 = arith.addf %7, %8 : vector<2x4xf32>
    %cst_1 = arith.constant dense<0.000000e+00> : vector<4xf32>
    %10 = vector.multi_reduction <add>, %9, %cst_1 [0] : vector<2x4xf32> to vector<4xf32>
    %11 = vector.shape_cast %10 : vector<4xf32> to vector<1x4xf32>
    %12 = arith.mulf %9, %9 : vector<2x4xf32>
    %cst_2 = arith.constant dense<0.000000e+00> : vector<4xf32>
    %13 = vector.multi_reduction <add>, %12, %cst_2 [0] : vector<2x4xf32> to vector<4xf32>
    %14 = vector.shape_cast %13 : vector<4xf32> to vector<1x4xf32>
    %15 = vector.extract_strided_slice %11 {offsets = [0, 0], sizes = [1, 2], strides = [1, 1]} : vector<1x4xf32> to vector<1x2xf32>
    %cst_3 = arith.constant dense<0.000000e+00> : vector<1xf32>
    %16 = vector.multi_reduction <add>, %15, %cst_3 [1] : vector<1x2xf32> to vector<1xf32>
    %17 = vector.shape_cast %16 : vector<1xf32> to vector<1x1xf32>
    %cst_4 = arith.constant 2.500000e-01 : f32
    %18 = vector.broadcast %cst_4 : f32 to vector<1x1xf32>
    %19 = arith.mulf %17, %18 : vector<1x1xf32>
    %20 = vector.extract_strided_slice %14 {offsets = [0, 0], sizes = [1, 2], strides = [1, 1]} : vector<1x4xf32> to vector<1x2xf32>
    %cst_5 = arith.constant dense<0.000000e+00> : vector<1xf32>
    %21 = vector.multi_reduction <add>, %20, %cst_5 [1] : vector<1x2xf32> to vector<1xf32>
    %22 = vector.shape_cast %21 : vector<1xf32> to vector<1x1xf32>
    %cst_6 = arith.constant 2.500000e-01 : f32
    %23 = vector.broadcast %cst_6 : f32 to vector<1x1xf32>
    %24 = arith.mulf %22, %23 : vector<1x1xf32>
    %25 = arith.mulf %19, %19 : vector<1x1xf32>
    %26 = arith.subf %24, %25 : vector<1x1xf32>
    %cst_7 = arith.constant 0.000000e+00 : f32
    %27 = vector.broadcast %cst_7 : f32 to vector<1x1xf32>
    %28 = arith.maximumf %26, %27 : vector<1x1xf32>
    %29 = vector.shape_cast %19 : vector<1x1xf32> to vector<1x1xf32>
    %30 = vector.broadcast %29 : vector<1x1xf32> to vector<1x2xf32>
    %31 = vector.shape_cast %28 : vector<1x1xf32> to vector<1x1xf32>
    %32 = vector.broadcast %31 : vector<1x1xf32> to vector<1x2xf32>
    %33 = vector.extract_strided_slice %11 {offsets = [0, 2], sizes = [1, 2], strides = [1, 1]} : vector<1x4xf32> to vector<1x2xf32>
    %cst_8 = arith.constant dense<0.000000e+00> : vector<1xf32>
    %34 = vector.multi_reduction <add>, %33, %cst_8 [1] : vector<1x2xf32> to vector<1xf32>
    %35 = vector.shape_cast %34 : vector<1xf32> to vector<1x1xf32>
    %cst_9 = arith.constant 2.500000e-01 : f32
    %36 = vector.broadcast %cst_9 : f32 to vector<1x1xf32>
    %37 = arith.mulf %35, %36 : vector<1x1xf32>
    %38 = vector.extract_strided_slice %14 {offsets = [0, 2], sizes = [1, 2], strides = [1, 1]} : vector<1x4xf32> to vector<1x2xf32>
    %cst_10 = arith.constant dense<0.000000e+00> : vector<1xf32>
    %39 = vector.multi_reduction <add>, %38, %cst_10 [1] : vector<1x2xf32> to vector<1xf32>
    %40 = vector.shape_cast %39 : vector<1xf32> to vector<1x1xf32>
    %cst_11 = arith.constant 2.500000e-01 : f32
    %41 = vector.broadcast %cst_11 : f32 to vector<1x1xf32>
    %42 = arith.mulf %40, %41 : vector<1x1xf32>
    %43 = arith.mulf %37, %37 : vector<1x1xf32>
    %44 = arith.subf %42, %43 : vector<1x1xf32>
    %cst_12 = arith.constant 0.000000e+00 : f32
    %45 = vector.broadcast %cst_12 : f32 to vector<1x1xf32>
    %46 = arith.maximumf %44, %45 : vector<1x1xf32>
    %47 = vector.shape_cast %37 : vector<1x1xf32> to vector<1x1xf32>
    %48 = vector.broadcast %47 : vector<1x1xf32> to vector<1x2xf32>
    %49 = vector.shape_cast %46 : vector<1x1xf32> to vector<1x1xf32>
    %50 = vector.broadcast %49 : vector<1x1xf32> to vector<1x2xf32>
    %51 = tpu.concatenate %30, %48 in 1 : vector<1x2xf32>, vector<1x2xf32> -> vector<1x4xf32>
    %52 = tpu.concatenate %32, %50 in 1 : vector<1x2xf32>, vector<1x2xf32> -> vector<1x4xf32>
    %53 = vector.broadcast %51 : vector<1x4xf32> to vector<2x4xf32>
    %54 = arith.subf %9, %53 : vector<2x4xf32>
    %cst_13 = arith.constant 9.99999974E-6 : f32
    %55 = vector.broadcast %cst_13 : f32 to vector<1x4xf32>
    %56 = arith.addf %52, %55 : vector<1x4xf32>
    %57 = math.rsqrt %56 : vector<1x4xf32>
    %58 = vector.broadcast %57 : vector<1x4xf32> to vector<2x4xf32>
    %59 = arith.mulf %54, %58 : vector<2x4xf32>
    %60 = vector.broadcast %5 : vector<1x4xf32> to vector<2x4xf32>
    %61 = arith.mulf %59, %60 : vector<2x4xf32>
    %62 = vector.broadcast %6 : vector<1x4xf32> to vector<2x4xf32>
    %63 = arith.addf %61, %62 : vector<2x4xf32>
    %64 = vector.extract_strided_slice %63 {offsets = [0, 0], sizes = [2, 2], strides = [1, 1]} : vector<2x4xf32> to vector<2x2xf32>
    %cst_14 = arith.constant dense<0xFF800000> : vector<2xf32>
    %65 = vector.multi_reduction <maximumf>, %64, %cst_14 [1] : vector<2x2xf32> to vector<2xf32>
    %66 = vector.shape_cast %65 : vector<2xf32> to vector<2x1xf32>
    %67 = vector.broadcast %66 : vector<2x1xf32> to vector<2x2xf32>
    %68 = arith.subf %64, %67 : vector<2x2xf32>
    %69 = math.exp %68 : vector<2x2xf32>
    %cst_15 = arith.constant dense<0.000000e+00> : vector<2xf32>
    %70 = vector.multi_reduction <add>, %69, %cst_15 [1] : vector<2x2xf32> to vector<2xf32>
    %71 = vector.shape_cast %70 : vector<2xf32> to vector<2x1xf32>
    %72 = tpu.reciprocal %71 {approx = true} : vector<2x1xf32> -> vector<2x1xf32>
    %73 = arith.mulf %71, %72 : vector<2x1xf32>
    %cst_16 = arith.constant 2.000000e+00 : f32
    %74 = vector.broadcast %cst_16 : f32 to vector<2x1xf32>
    %75 = arith.subf %74, %73 : vector<2x1xf32>
    %76 = arith.mulf %72, %75 : vector<2x1xf32>
    %77 = vector.broadcast %76 : vector<2x1xf32> to vector<2x2xf32>
    %78 = arith.mulf %69, %77 : vector<2x2xf32>
    %79 = vector.extract_strided_slice %63 {offsets = [0, 2], sizes = [2, 2], strides = [1, 1]} : vector<2x4xf32> to vector<2x2xf32>
    %cst_17 = arith.constant dense<0xFF800000> : vector<2xf32>
    %80 = vector.multi_reduction <maximumf>, %79, %cst_17 [1] : vector<2x2xf32> to vector<2xf32>
    %81 = vector.shape_cast %80 : vector<2xf32> to vector<2x1xf32>
    %82 = vector.broadcast %81 : vector<2x1xf32> to vector<2x2xf32>
    %83 = arith.subf %79, %82 : vector<2x2xf32>
    %84 = math.exp %83 : vector<2x2xf32>
    %cst_18 = arith.constant dense<0.000000e+00> : vector<2xf32>
    %85 = vector.multi_reduction <add>, %84, %cst_18 [1] : vector<2x2xf32> to vector<2xf32>
    %86 = vector.shape_cast %85 : vector<2xf32> to vector<2x1xf32>
    %87 = tpu.reciprocal %86 {approx = true} : vector<2x1xf32> -> vector<2x1xf32>
    %88 = arith.mulf %86, %87 : vector<2x1xf32>
    %cst_19 = arith.constant 2.000000e+00 : f32
    %89 = vector.broadcast %cst_19 : f32 to vector<2x1xf32>
    %90 = arith.subf %89, %88 : vector<2x1xf32>
    %91 = arith.mulf %87, %90 : vector<2x1xf32>
    %92 = vector.broadcast %91 : vector<2x1xf32> to vector<2x2xf32>
    %93 = arith.mulf %84, %92 : vector<2x2xf32>
    %94 = tpu.concatenate %78, %93 in 1 : vector<2x2xf32>, vector<2x2xf32> -> vector<2x4xf32>
    %95 = arith.addf %94, %2 : vector<2x4xf32>
    %c0_20 = arith.constant 0 : index
    %c0_21 = arith.constant 0 : index
    %96 = vector.load %arg1[%c0_20, %c0_21] : memref<2x4xf32, #tpu.memory_space<vmem>>, vector<2x4xf32>
    tpu.vector_store %arg1[%c0_20, %c0_21], %95 {strides = array<i32>} : memref<2x4xf32, #tpu.memory_space<vmem>>, vector<2x4xf32>,
    return
  }
}

</mosaic_0001>

<llo_original>
// kernel: model_forward.1
$region0: #{model_forward.1}
  #allocation0 [shape = 'u32[]', space=smem, size = 0x4, offset = 0x4, fixed_abs, tag = 'smem constant byte address 0x4 - core index']
  #allocation1 [shape = 'u32[72,128]{1,0:T(1,128)}', space=vmem, size = 0x9000, scoped, tag = 'internal scratch']
  %s0 = inlined_call_operand.vmem [shape: f32[13,6], index: 0, kind: input, shape index: {}]
  %s1 = inlined_call_operand.vmem [shape: f32[2,4], index: 1, kind: output, shape index: {}]
  %s2 = sld [smem:[#allocation0]]
  $region14: #{model_forward.1} parent=0
    _
  %s4 = ssub.s32 1, %s2
  %s5 = scalar_select 0, %s4, %s2
  // Predicated region
  $region2: #{model_forward.1} parent=0 // pred_check
    _
  $region3: #{model_forward.1} parent=0 // pred_check_branch
    %7 = sbr.rel (0) target = $region5
  $region4: #{model_forward.1} parent=0 // pred_region
    _
  $region5: #{model_forward.1} parent=0 // pred_fallthru
    _
  %v8 = vld [vmem:[%s0] sm:$0xff]
  %v9 = vld [vmem:[%s0 + $0x8] sm:$0x1f]
  %v10 = vperm.slane %v9, 2
  %vm13 = vcmask 1043456
  %v14 = vrot.slane %v8, 4
  %v15 = vrot.slane %v9, 4
  %v16 = vsel %vm13, %v14, %v15
  %vm17 = vcmask 48128
  %v18 = vsel %vm17, %v8, 0
  %vm20 = vcmask 1045504
  %v21 = vsel %vm20, %v16, 0
  %23 = vmatpush.msra.mxu0 0.0
  %24 = vmatpush.msra.mxu0 0.0
  %25 = vmatpush.msra.mxu0 0.0
  %26 = vmatpush.msra.mxu0 0.0
  %27 = vmatpush.msra.mxu0 0.0
  %28 = vmatpush.msra.mxu0 0.0
  %29 = vmatpush.msra.mxu0 0.0
  %30 = vmatpush.msra.mxu0 0.0
  %31 = vmatpush.msra.mxu0 0.0
  %32 = vmatpush.msra.mxu0 0.0
  %33 = vmatpush.msra.mxu0 0.0
  %34 = vmatpush.msra.mxu0 0.0
  %35 = vmatpush.msra.mxu0 0.0
  %36 = vmatpush.msra.mxu0 0.0
  %37 = vmatpush.msra.mxu0 0.0
  %38 = vmatpush.msra.mxu0 %v21
  %39 = vmatmul.f32.gmra.mxu0 %v18
  %v40 = vpop.f32.mrf.mxu0
  %v41 = vadd.f32 %v10, %v40
  %42 = vdwg.mxu0
  %vm43 = vcmask 25600
  %v44 = vsel %vm43, %v41, 0.0
  %v45 = vrot.slane %v44, 4
  %v46 = vadd.f32 %v44, %v45
  %v47 = vrot.slane %v46, 2
  %v48 = vadd.f32 %v46, %v47
  %v49 = vrot.slane %v48, 1
  %v50 = vadd.f32 %v48, %v49
  %v51 = vmul.f32 %v41, %v41
  %v52 = vsel %vm43, %v51, 0.0
  %v53 = vrot.slane %v52, 4
  %v54 = vadd.f32 %v52, %v53
  %v55 = vrot.slane %v54, 2
  %v56 = vadd.f32 %v54, %v55
  %v57 = vrot.slane %v56, 1
  %v58 = vadd.f32 %v56, %v57
  %vm59 = vcmask 15360
  %v60 = vsel %vm59, %v50, 0.0
  %61 = vadd.xlane.f32.xlu0 %v60
  %v62 = vpop.xlane.xlu0 %61
  %v63 = vmul.f32 %v62, 0.25
  %v64 = vsel %vm59, %v58, 0.0
  %65 = vadd.xlane.f32.xlu0 %v64
  %v66 = vpop.xlane.xlu0 %65
  %v67 = vmul.f32 %v66, 0.25
  %v68 = vmul.f32 %v63, %v63
  %v69 = vsub.f32 %v67, %v68
  %v70 = vmax.f32 %v69, 0.0
  %72 = vrot.lane.b32.xlu0 %v50, 126
  %v73 = vpop.permute.xlu0 %72
  %v75 = vsel %vm59, %v73, 0.0
  %76 = vadd.xlane.f32.xlu0 %v75
  %v77 = vpop.xlane.xlu0 %76
  %v78 = vmul.f32 %v77, 0.25
  %80 = vrot.lane.b32.xlu0 %v58, 126
  %v81 = vpop.permute.xlu0 %80
  %v83 = vsel %vm59, %v81, 0.0
  %84 = vadd.xlane.f32.xlu0 %v83
  %v85 = vpop.xlane.xlu0 %84
  %v86 = vmul.f32 %v85, 0.25
  %v87 = vmul.f32 %v78, %v78
  %v88 = vsub.f32 %v86, %v87
  %v89 = vmax.f32 %v88, 0.0
  %v90 = vsel %vm59, %v63, %v78
  %v91 = vsel %vm59, %v70, %v89
  %v92 = vperm.slane %v90, 0
  %v93 = vsub.f32 %v41, %v92
  %v94 = vadd.f32 %v91, 1e-05
  %v95 = vrsqrt.pop %v94
  %v96 = vmul.f32 %v95, %v94
  %v97 = vmul.f32 %v96, %v95
  %v98 = vmul.f32 0.5, %v97
  %v99 = vsub.f32 1.5, %v98
  %v100 = vmul.f32 %v95, %v99
  %vm101 = vweird.f32 %v94
  %vm102 = vweird.f32 %v95
  %vm103 = vmor %vm101, %vm102
  %v104 = vsel %vm103, %v95, %v100
  %v105 = vperm.slane %v104, 0
  %v106 = vmul.f32 %v93, %v105
  %v107 = vperm.slane %v9, 3
  %v108 = vmul.f32 %v106, %v107
  %v109 = vperm.slane %v9, 4
  %v110 = vadd.f32 %v108, %v109
  %vm111 = vcmask 9216
  %v112 = vsel %vm111, %v110, -inf
  %113 = vmax.xlane.f32.xlu0 %v112
  %v114 = vpop.xlane.xlu0 %113
  %v115 = vsub.f32 %v110, %v114
  %v116 = vmul.f32 %v115, 1.442695
  %v117 = vpow.pop %v116
  %v118 = vsel %vm111, %v117, 0.0
  %119 = vadd.xlane.f32.xlu0 %v118
  %v120 = vpop.xlane.xlu0 %119
  %v121 = vrcp.pop %v120
  %v122 = vmul.f32 %v120, %v121
  %v123 = vsub.f32 2.0, %v122
  %v124 = vmul.f32 %v121, %v123
  %v125 = vmul.f32 %v117, %v124
  %vm126 = vcmask 25616
  %v127 = vsel %vm126, %v110, -inf
  %128 = vmax.xlane.f32.xlu0 %v127
  %v129 = vpop.xlane.xlu0 %128
  %v130 = vsub.f32 %v110, %v129
  %v131 = vmul.f32 %v130, 1.442695
  %v132 = vpow.pop %v131
  %134 = vrot.lane.b32.xlu0 %v132, 126
  %v135 = vpop.permute.xlu0 %134
  %v137 = vsel %vm111, %v135, 0.0
  %138 = vadd.xlane.f32.xlu0 %v137
  %v139 = vpop.xlane.xlu0 %138
  %v140 = vrcp.pop %v139
  %v141 = vmul.f32 %v139, %v140
  %v142 = vsub.f32 2.0, %v141
  %v143 = vmul.f32 %v140, %v142
  %v144 = vmul.f32 %v132, %v143
  %v145 = vsel %vm59, %v125, %v144
  %v146 = vrot.slane %v8, 2
  %v148 = vadd.f32 %v145, %v146
  %149 = vst.msk [vmem:[%s1] sm:$0x3] %vm43, %v148
  // Predicated region
  $region6: #{model_forward.1} parent=0 // pred_check
    _
  $region7: #{model_forward.1} parent=0 // pred_check_branch
    %151 = sbr.rel (0) target = $region9
  $region8: #{model_forward.1} parent=0 // pred_region
    _
  $region9: #{model_forward.1} parent=0 // pred_fallthru
    _
  // Predicated region
  $region10: #{model_forward.1} parent=0 // pred_check
    _
  $region11: #{model_forward.1} parent=0 // pred_check_branch
    %153 = sbr.rel (0) target = $region13
  $region12: #{model_forward.1} parent=0 // pred_region
    _
  $region13: #{model_forward.1} parent=0 // pred_fallthru
    _

</llo_original>
